<compile_context>
chip_gen: v7x
topology: tpu7x:2x2x1
jax: 0.10.0
libtpu: 0.0.40
codegen_flags: <defaults>
</compile_context>

<pallas_src>
import functools

import jax
import jax.numpy as jnp
from jax.experimental import pallas as pl
from jax.experimental.pallas import tpu as pltpu

EPS = 1e-9


# ----------------------------------------------------------------------------
# One-time capability / hardware queries (resolved at import, not per call).
# ----------------------------------------------------------------------------
def _const_spec_kwargs():
    """Single-buffer the constant operands if this JAX supports Buffered(1)."""
    if hasattr(pl, "Buffered"):
        try:
            pl.BlockSpec((1, 128), lambda i: (0, 0), pipeline_mode=pl.Buffered(1))
            return {"pipeline_mode": pl.Buffered(1)}
        except Exception:
            pass
    # TODO(synk): fallback could manually DMA constants into scratch VMEM once
    # at grid step 0 to guarantee a single copy on older JAX versions.
    return {}


_CONST_KW = _const_spec_kwargs()


def _vmem_budget_bytes():
    try:
        cap = int(pltpu.get_tpu_info().vmem_capacity_bytes)
    except Exception:
        cap = 64 * 2**20  # conservative default: assume v7x-sized VMEM
    return (cap * 3) // 4  # leave headroom; never request all of VMEM


_VMEM_BUDGET = _vmem_budget_bytes()


# ----------------------------------------------------------------------------
# Kernel
# ----------------------------------------------------------------------------
def _make_kernel(eps, use_bf16_matmul):
    def sublayer_kernel(x_ref, gamma_ref, beta_ref, w_ref, b_ref, o_ref):
        xf = x_ref[...].astype(jnp.float32)                 # (TM, D), stats in f32
        d = xf.shape[-1]

        mean = jnp.mean(xf, axis=-1, keepdims=True)         # (TM, 1)
        diff = xf - mean
        # torch.std default: unbiased (N-1); eps added to std (not var).
        var_unbiased = jnp.sum(diff * diff, axis=-1, keepdims=True) / (d - 1)
        std = jnp.sqrt(var_unbiased)
        inv = 1.0 / (std + eps)                             # exact reciprocal

        gamma = gamma_ref[...].astype(jnp.float32)          # (1, D)
        beta = beta_ref[...].astype(jnp.float32)            # (1, D)
        normed = (diff * inv) * gamma + beta                # (TM, D) f32

        # Sublayer: Linear(d_model, d_model) on the MXU, f32 accumulation.
        w = w_ref[...]
        if use_bf16_matmul and w.dtype == jnp.float32:
            y = jnp.dot(normed.astype(jnp.bfloat16), w.astype(jnp.bfloat16),
                        preferred_element_type=jnp.float32)
        else:
            y = jnp.dot(normed.astype(w.dtype), w,
                        preferred_element_type=jnp.float32)
        y = y + b_ref[...].astype(jnp.float32)

        # dropout (eval mode) == identity.  Residual re-read here so no f32
        # tile stays live across the matmul (lower vreg/VMEM pressure).
        o_ref[...] = (x_ref[...].astype(jnp.float32) + y).astype(o_ref.dtype)

    return sublayer_kernel


# ----------------------------------------------------------------------------
# Tiling helpers
# ----------------------------------------------------------------------------
def _row_quantum(dtype):
    # sublane packing quantum: 8 rows (4-byte), 16 (2-byte), 32 (1-byte)
    return max(8, 32 // jnp.dtype(dtype).itemsize)


def _choose_tile(m, q, tile_rows):
    tile_rows = max(q, (tile_rows // q) * q)
    if m <= q:
        return q
    if m <= tile_rows:
        # Split small inputs into >= 2 grid steps so both v7x TensorCores
        # get work on the "parallel" axis.
        half = (m + 1) // 2
        return ((half + q - 1) // q) * q
    return tile_rows


# ----------------------------------------------------------------------------
# Wrapper
# ----------------------------------------------------------------------------
@functools.partial(
    jax.jit, static_argnames=("tile_rows", "use_bf16_matmul", "eps")
)
def sublayer_connection(x, gamma, beta, w, b, *, tile_rows=512,
                        use_bf16_matmul=False, eps=EPS):
    """x: [B, S, D]; gamma, beta, b: [D]; w: [D, D]."""
    B, S, D = x.shape
    M = B * S
    dtype = x.dtype
    itemsize = jnp.dtype(dtype).itemsize
    q = _row_quantum(dtype)
    tile = _choose_tile(M, q, tile_rows)

    n_const_bufs = 1 if _CONST_KW else 2
    const_bytes = (D * D + 3 * D) * itemsize

    def vmem_needed(t):
        return (4 * t * D * itemsize          # double-buffered in + out tiles
                + n_const_bufs * const_bytes  # resident gamma/beta/W/bias
                + 3 * t * D * 4)              # f32 intermediates (diff/normed/acc)

    # Shrink the row tile if the budget (3/4 of VMEM) would be exceeded.
    while tile > q and vmem_needed(tile) > _VMEM_BUDGET:
        tile = max(q, ((tile // 2) // q) * q)

    grid = (pl.cdiv(M, tile),)   # no jnp.pad: Pallas handles the partial block
    vmem_limit = int(min(_VMEM_BUDGET,
                         max(int(1.25 * vmem_needed(tile)), 32 * 2**20)))

    x2 = x.reshape(M, D)
    gamma2 = gamma.reshape(1, D)
    beta2 = beta.reshape(1, D)
    b2 = b.reshape(1, D)

    out = pl.pallas_call(
        _make_kernel(eps, use_bf16_matmul),
        out_shape=jax.ShapeDtypeStruct((M, D), dtype),
        grid_spec=pltpu.PrefetchScalarGridSpec(
            num_scalar_prefetch=0,
            grid=grid,
            in_specs=[
                pl.BlockSpec((tile, D), lambda i: (i, 0)),            # x rows
                pl.BlockSpec((1, D), lambda i: (0, 0), **_CONST_KW),  # gamma
                pl.BlockSpec((1, D), lambda i: (0, 0), **_CONST_KW),  # beta
                pl.BlockSpec((D, D), lambda i: (0, 0), **_CONST_KW),  # W
                pl.BlockSpec((1, D), lambda i: (0, 0), **_CONST_KW),  # bias
            ],
            out_specs=pl.BlockSpec((tile, D), lambda i: (i, 0)),
        ),
        compiler_params=pltpu.CompilerParams(
            dimension_semantics=("parallel",),
            vmem_limit_bytes=vmem_limit,
        ),
    )(x2, gamma2, beta2, w, b2)

    return out.reshape(B, S, D)


# ----------------------------------------------------------------------------
# Pure-JAX reference (high-precision matmul so the check is about the kernel,
# not about XLA's default f32->bf16 matmul precision on TPU).
# ----------------------------------------------------------------------------
def reference(x, gamma, beta, w, b, eps=EPS):
    xf = x.astype(jnp.float32)
    d = xf.shape[-1]
    mean = jnp.mean(xf, axis=-1, keepdims=True)
    diff = xf - mean
    std = jnp.sqrt(jnp.sum(diff * diff, axis=-1, keepdims=True) / (d - 1))
    normed = gamma * diff / (std + eps) + beta
    y = jnp.dot(normed.reshape(-1, d), w, precision="highest").reshape(xf.shape)
    y = y + b
    return (xf + y).astype(x.dtype)


if __name__ == "__main__":
    # S=9 deliberately exercises the partial-last-block path (M=18 -> tile=16,
    # grid=(2,) so both v7x TensorCores would get a step).
    B, S, D = 2, 9, 128
    key = jax.random.PRNGKey(0)
    kx, kw, kb, kg, kbt = jax.random.split(key, 5)

    x = jax.random.normal(kx, (B, S, D), dtype=jnp.float32)
    # LayerNorm params (module init is ones/zeros; perturb to test the math)
    gamma = 1.0 + 0.1 * jax.random.normal(kg, (D,), dtype=jnp.float32)
    beta = 0.1 * jax.random.normal(kbt, (D,), dtype=jnp.float32)
    # deterministic synthetic sublayer (Linear) weights
    w = jax.random.normal(kw, (D, D), dtype=jnp.float32) * 0.02
    b = jax.random.normal(kb, (D,), dtype=jnp.float32) * 0.02

    out = jax.block_until_ready(sublayer_connection(x, gamma, beta, w, b))
    ref = reference(x, gamma, beta, w, b)

    assert out.shape == (B, S, D)
    max_err = float(jnp.max(jnp.abs(out.astype(jnp.float32)
                                    - ref.astype(jnp.float32))))
    assert max_err < 5e-3, max_err
    print("KERNEL_OK")
</pallas_src>

<mosaic_0001>
module attributes {stable_mosaic.version = 11 : i64} {
  func.func @sublayer_kernel(%arg0: i32, %arg1: memref<16x128xf32, #tpu.memory_space<vmem>>, %arg2: memref<1x128xf32, #tpu.memory_space<vmem>>, %arg3: memref<1x128xf32, #tpu.memory_space<vmem>>, %arg4: memref<128x128xf32, #tpu.memory_space<vmem>>, %arg5: memref<1x128xf32, #tpu.memory_space<vmem>>, %arg6: memref<16x128xf32, #tpu.memory_space<vmem>>) attributes {dimension_semantics = [#tpu.dimension_semantics<parallel>], iteration_bounds = array<i64: 2>, scalar_prefetch = 0 : i64, scratch_operands = 0 : i64, tpu.core_type = #tpu.core_type<tc>, window_params = [{transform_indices = @transform_0, window_bounds = array<i64: 16, 128>}, {pipeline_mode = #tpu.pipeline_mode<synchronous>, transform_indices = @transform_1, window_bounds = array<i64: 1, 128>}, {pipeline_mode = #tpu.pipeline_mode<synchronous>, transform_indices = @transform_2, window_bounds = array<i64: 1, 128>}, {pipeline_mode = #tpu.pipeline_mode<synchronous>, transform_indices = @transform_3, window_bounds = array<i64: 128, 128>}, {pipeline_mode = #tpu.pipeline_mode<synchronous>, transform_indices = @transform_4, window_bounds = array<i64: 1, 128>}, {transform_indices = @transform_5, window_bounds = array<i64: 16, 128>}]} {
    %c0 = arith.constant 0 : index
    %c0_0 = arith.constant 0 : index
    %0 = vector.load %arg1[%c0, %c0_0] : memref<16x128xf32, #tpu.memory_space<vmem>>, vector<16x128xf32>
    %cst = arith.constant dense<0.000000e+00> : vector<16xf32>
    %1 = vector.multi_reduction <add>, %0, %cst [1] : vector<16x128xf32> to vector<16xf32>
    %2 = vector.shape_cast %1 : vector<16xf32> to vector<16x1xf32>
    %cst_1 = arith.constant 1.280000e+02 : f32
    %3 = vector.broadcast %cst_1 : f32 to vector<16x1xf32>
    %4 = arith.divf %2, %3 : vector<16x1xf32>
    %5 = vector.broadcast %4 : vector<16x1xf32> to vector<16x128xf32>
    %6 = arith.subf %0, %5 : vector<16x128xf32>
    %7 = arith.mulf %6, %6 : vector<16x128xf32>
    %cst_2 = arith.constant dense<0.000000e+00> : vector<16xf32>
    %8 = vector.multi_reduction <add>, %7, %cst_2 [1] : vector<16x128xf32> to vector<16xf32>
    %9 = vector.shape_cast %8 : vector<16xf32> to vector<16x1xf32>
    %cst_3 = arith.constant 1.270000e+02 : f32
    %10 = vector.broadcast %cst_3 : f32 to vector<16x1xf32>
    %11 = arith.divf %9, %10 : vector<16x1xf32>
    %12 = math.sqrt %11 : vector<16x1xf32>
    %cst_4 = arith.constant 9.99999971E-10 : f32
    %13 = vector.broadcast %cst_4 : f32 to vector<16x1xf32>
    %14 = arith.addf %12, %13 : vector<16x1xf32>
    %cst_5 = arith.constant 1.000000e+00 : f32
    %15 = vector.broadcast %cst_5 : f32 to vector<16x1xf32>
    %16 = arith.divf %15, %14 : vector<16x1xf32>
    %c0_6 = arith.constant 0 : index
    %c0_7 = arith.constant 0 : index
    %17 = vector.load %arg2[%c0_6, %c0_7] : memref<1x128xf32, #tpu.memory_space<vmem>>, vector<1x128xf32>
    %c0_8 = arith.constant 0 : index
    %c0_9 = arith.constant 0 : index
    %18 = vector.load %arg3[%c0_8, %c0_9] : memref<1x128xf32, #tpu.memory_space<vmem>>, vector<1x128xf32>
    %19 = vector.broadcast %16 : vector<16x1xf32> to vector<16x128xf32>
    %20 = arith.mulf %6, %19 : vector<16x128xf32>
    %21 = vector.broadcast %17 : vector<1x128xf32> to vector<16x128xf32>
    %22 = arith.mulf %20, %21 : vector<16x128xf32>
    %23 = vector.broadcast %18 : vector<1x128xf32> to vector<16x128xf32>
    %24 = arith.addf %22, %23 : vector<16x128xf32>
    %c0_10 = arith.constant 0 : index
    %c0_11 = arith.constant 0 : index
    %25 = vector.load %arg4[%c0_10, %c0_11] : memref<128x128xf32, #tpu.memory_space<vmem>>, vector<128x128xf32>
    %cst_12 = arith.constant dense<0.000000e+00> : vector<16x128xf32>
    %26 = tpu.matmul %24, %25, %cst_12 {dimension_numbers = #tpu.dot_dimension_numbers<[1], [0], [0], [1], [0, 0, 1, 1], [], []>} : vector<16x128xf32>, vector<128x128xf32>, vector<16x128xf32> -> vector<16x128xf32>
    %c0_13 = arith.constant 0 : index
    %c0_14 = arith.constant 0 : index
    %27 = vector.load %arg5[%c0_13, %c0_14] : memref<1x128xf32, #tpu.memory_space<vmem>>, vector<1x128xf32>
    %28 = vector.broadcast %27 : vector<1x128xf32> to vector<16x128xf32>
    %29 = arith.addf %26, %28 : vector<16x128xf32>
    %c0_15 = arith.constant 0 : index
    %c0_16 = arith.constant 0 : index
    %30 = vector.load %arg1[%c0_15, %c0_16] : memref<16x128xf32, #tpu.memory_space<vmem>>, vector<16x128xf32>
    %31 = arith.addf %30, %29 : vector<16x128xf32>
    %c0_17 = arith.constant 0 : index
    %c0_18 = arith.constant 0 : index
    %32 = vector.load %arg6[%c0_17, %c0_18] : memref<16x128xf32, #tpu.memory_space<vmem>>, vector<16x128xf32>
    tpu.vector_store %arg6[%c0_17, %c0_18], %31 {strides = array<i32>} : memref<16x128xf32, #tpu.memory_space<vmem>>, vector<16x128xf32>,
    return
  }
  func.func @transform_0(%arg0: i32) -> (i32, i32) {
    %c0_i32 = arith.constant 0 : i32
    %c0_i32_0 = arith.constant 0 : i32
    return %arg0, %c0_i32 : i32, i32
  }
  func.func @transform_1(%arg0: i32) -> (i32, i32) {
    %c0_i32 = arith.constant 0 : i32
    %c0_i32_0 = arith.constant 0 : i32
    %c0_i32_1 = arith.constant 0 : i32
    return %c0_i32, %c0_i32_0 : i32, i32
  }
  func.func @transform_2(%arg0: i32) -> (i32, i32) {
    %c0_i32 = arith.constant 0 : i32
    %c0_i32_0 = arith.constant 0 : i32
    %c0_i32_1 = arith.constant 0 : i32
    return %c0_i32, %c0_i32_0 : i32, i32
  }
  func.func @transform_3(%arg0: i32) -> (i32, i32) {
    %c0_i32 = arith.constant 0 : i32
    %c0_i32_0 = arith.constant 0 : i32
    %c0_i32_1 = arith.constant 0 : i32
    return %c0_i32, %c0_i32_0 : i32, i32
  }
  func.func @transform_4(%arg0: i32) -> (i32, i32) {
    %c0_i32 = arith.constant 0 : i32
    %c0_i32_0 = arith.constant 0 : i32
    %c0_i32_1 = arith.constant 0 : i32
    return %c0_i32, %c0_i32_0 : i32, i32
  }
  func.func @transform_5(%arg0: i32) -> (i32, i32) {
    %c0_i32 = arith.constant 0 : i32
    %c0_i32_0 = arith.constant 0 : i32
    return %arg0, %c0_i32 : i32, i32
  }
}

</mosaic_0001>

<llo_original>
// kernel: sublayer_connection.1
$region0: #{sublayer_connection.1}
  #allocation0 [shape = 'u32[]', space=smem, size = 0x4, offset = 0x4, fixed_abs, tag = 'smem constant byte address 0x4 - core index']
  #allocation1 [shape = 'u32[144,128]{1,0:T(1,128)}', space=vmem, size = 0x12000, scoped, tag = 'internal scratch']
  %s0 = inlined_call_operand.vmem [shape: f32[18,128], index: 0, kind: input, shape index: {}]
  %s1 = inlined_call_operand.hbm [shape: f32[1,128], index: 1, kind: input, shape index: {}]
  %s2 = inlined_call_operand.hbm [shape: f32[1,128], index: 2, kind: input, shape index: {}]
  %s3 = inlined_call_operand.vmem [shape: f32[128,128], index: 3, kind: input, shape index: {}]
  %s4 = inlined_call_operand.vmem [shape: f32[1,128], index: 4, kind: input, shape index: {}]
  %s5 = inlined_call_operand.vmem [shape: f32[18,128], index: 5, kind: output, shape index: {}]
  %s6 = sld [smem:[#allocation0]]
  $region109: #{sublayer_connection.1} parent=0
    _
  %s8 = ssub.s32 1, %s6
  %s9 = scalar_select 0, %s8, %s6
  $region1: #{sublayer_connection.1} parent=0
    #allocation2 [shape = 'u8[512]{0}', space=vmem, size = 0x400, scoped, tag = 'input window, operand 1, single buffered']
    #allocation3 [shape = 's32[2]{0}', space=sflag, size = 0x8, scoped, tag = 'scoped memory for sublayer_connection.1']
    #allocation4 [shape = 'u8[512]{0}', space=vmem, size = 0x400, scoped, tag = 'input window, operand 2, single buffered']
    #allocation5 [shape = 's32[1]{0}', space=sflag, size = 0x4, scoped, tag = 'scoped memory for sublayer_connection.1']
    #allocation6 [shape = 'u8[16384]{0}', space=vmem, size = 0x4000, scoped, tag = 'output window, operand 0']
    %10 = vsyncpa [#allocation3], 0
    %11 = vsyncpa [#allocation5], 0
    loop: start=0, step=1, limit=4
    $region2: #{sublayer_connection.1} parent=1 // loop_pre_header
      _
    $region3: #{sublayer_connection.1} parent=1 // loop_header
      %s13 = sphi 0, %s17
      %p14 = scmp.ge.s32.totalorder %s13, 4
      %s23 = sphi 0, %s25
      %s26 = sphi 0, %s23
      %s27 = sphi 0, %s26
      %s43 = sphi 0, %s27
      %s47 = sphi 0, %s47
      %s49 = sphi 0, %s47
      %s50 = sphi 0, %s49
      %s64 = sphi 0, %s50
      %s68 = sphi 0, %s68
      %s70 = sphi 0, %s68
      %s71 = sphi 0, %s70
      %s85 = sphi 0, %s71
      %s89 = sphi 0, %s89
      %s91 = sphi 0, %s89
      %s92 = sphi 0, %s91
      %s106 = sphi 0, %s92
      %s110 = sphi 0, %s110
      %s112 = sphi 0, %s110
      %s113 = sphi 0, %s112
      %s127 = sphi 0, %s113
      %s133 = sphi 0, %s135
      %s136 = sphi 0, %s133
      %s137 = sphi 0, %s136
      %s153 = sphi 0, %s137
    $region4: #{sublayer_connection.1} parent=1 // loop_header_branch
      %16 = sbr.rel (%p14) target = $region8
    $region5: #{sublayer_connection.1} parent=1 // loop_body
      %s18 = ssub.s32 %s13, 1
      %s19 = ssub.s32 %s13, 2
      %s20 = sadd.s32 %s13, 1
      %s21 = ssub.s32 %s13, %s20
      %p22 = scmp.eq.s32.totalorder %s21, 0
      %s24 = sadd.s32 %s23, 1
      %s25 = scalar_select %p22, %s23, %s24
      %p28 = pneg %p22
      %p29 = scmp.eq.s32.totalorder %s13, 1
      %p30 = por %p28, %p29
      %p31 = scmp.ne.s32.totalorder %s23, %s26
      %p32 = scmp.eq.s32.totalorder %s13, 0
      %p33 = por %p31, %p32
      %p34 = scmp.ne.s32.totalorder %s23, %s26
      %p35 = scmp.eq.s32.totalorder %s18, 1
      %p36 = por %p34, %p35
      %p37 = scmp.ne.s32.totalorder %s26, %s27
      %p38 = scmp.eq.s32.totalorder %s18, 0
      %p39 = por %p37, %p38
      %p40 = scmp.ne.s32.totalorder %s26, %s27
      %p41 = scmp.eq.s32.totalorder %s19, 1
      %p42 = por %p40, %p41
      %p44 = scmp.ne.s32.totalorder %s27, %s43
      %p45 = scmp.eq.s32.totalorder %s19, 0
      %p46 = por %p44, %p45
      %s48 = sadd.s32 %s47, 1
      %p51 = scmp.eq.s32.totalorder %s13, 1
      %p52 = scmp.ne.s32.totalorder %s47, %s49
      %p53 = scmp.eq.s32.totalorder %s13, 0
      %p54 = por %p52, %p53
      %p55 = scmp.ne.s32.totalorder %s47, %s49
      %p56 = scmp.eq.s32.totalorder %s18, 1
      %p57 = por %p55, %p56
      %p58 = scmp.ne.s32.totalorder %s49, %s50
      %p59 = scmp.eq.s32.totalorder %s18, 0
      %p60 = por %p58, %p59
      %p61 = scmp.ne.s32.totalorder %s49, %s50
      %p62 = scmp.eq.s32.totalorder %s19, 1
      %p63 = por %p61, %p62
      %p65 = scmp.ne.s32.totalorder %s50, %s64
      %p66 = scmp.eq.s32.totalorder %s19, 0
      %p67 = por %p65, %p66
      %s69 = sadd.s32 %s68, 1
      %p72 = scmp.eq.s32.totalorder %s13, 1
      %p73 = scmp.ne.s32.totalorder %s68, %s70
      %p74 = scmp.eq.s32.totalorder %s13, 0
      %p75 = por %p73, %p74
      %p76 = scmp.ne.s32.totalorder %s68, %s70
      %p77 = scmp.eq.s32.totalorder %s18, 1
      %p78 = por %p76, %p77
      %p79 = scmp.ne.s32.totalorder %s70, %s71
      %p80 = scmp.eq.s32.totalorder %s18, 0
      %p81 = por %p79, %p80
      %p82 = scmp.ne.s32.totalorder %s70, %s71
      %p83 = scmp.eq.s32.totalorder %s19, 1
      %p84 = por %p82, %p83
      %p86 = scmp.ne.s32.totalorder %s71, %s85
      %p87 = scmp.eq.s32.totalorder %s19, 0
      %p88 = por %p86, %p87
      %s90 = sadd.s32 %s89, 1
      %p93 = scmp.eq.s32.totalorder %s13, 1
      %p94 = scmp.ne.s32.totalorder %s89, %s91
      %p95 = scmp.eq.s32.totalorder %s13, 0
      %p96 = por %p94, %p95
      %p97 = scmp.ne.s32.totalorder %s89, %s91
      %p98 = scmp.eq.s32.totalorder %s18, 1
      %p99 = por %p97, %p98
      %p100 = scmp.ne.s32.totalorder %s91, %s92
      %p101 = scmp.eq.s32.totalorder %s18, 0
      %p102 = por %p100, %p101
      %p103 = scmp.ne.s32.totalorder %s91, %s92
      %p104 = scmp.eq.s32.totalorder %s19, 1
      %p105 = por %p103, %p104
      %p107 = scmp.ne.s32.totalorder %s92, %s106
      %p108 = scmp.eq.s32.totalorder %s19, 0
      %p109 = por %p107, %p108
      %s111 = sadd.s32 %s110, 1
      %p114 = scmp.eq.s32.totalorder %s13, 1
      %p115 = scmp.ne.s32.totalorder %s110, %s112
      %p116 = scmp.eq.s32.totalorder %s13, 0
      %p117 = por %p115, %p116
      %p118 = scmp.ne.s32.totalorder %s110, %s112
      %p119 = scmp.eq.s32.totalorder %s18, 1
      %p120 = por %p118, %p119
      %p121 = scmp.ne.s32.totalorder %s112, %s113
      %p122 = scmp.eq.s32.totalorder %s18, 0
      %p123 = por %p121, %p122
      %p124 = scmp.ne.s32.totalorder %s112, %s113
      %p125 = scmp.eq.s32.totalorder %s19, 1
      %p126 = por %p124, %p125
      %p128 = scmp.ne.s32.totalorder %s113, %s127
      %p129 = scmp.eq.s32.totalorder %s19, 0
      %p130 = por %p128, %p129
      %s131 = ssub.s32 %s13, %s20
      %p132 = scmp.eq.s32.totalorder %s131, 0
      %s134 = sadd.s32 %s133, 1
      %s135 = scalar_select %p132, %s133, %s134
      %p138 = pneg %p132
      %p139 = scmp.eq.s32.totalorder %s13, 1
      %p140 = por %p138, %p139
      %p141 = scmp.ne.s32.totalorder %s133, %s136
      %p142 = scmp.eq.s32.totalorder %s13, 0
      %p143 = por %p141, %p142
      %p144 = scmp.ne.s32.totalorder %s133, %s136
      %p145 = scmp.eq.s32.totalorder %s18, 1
      %p146 = por %p144, %p145
      %p147 = scmp.ne.s32.totalorder %s136, %s137
      %p148 = scmp.eq.s32.totalorder %s18, 0
      %p149 = por %p147, %p148
      %p150 = scmp.ne.s32.totalorder %s136, %s137
      %p151 = scmp.eq.s32.totalorder %s19, 1
      %p152 = por %p150, %p151
      %p154 = scmp.ne.s32.totalorder %s137, %s153
      %p155 = scmp.eq.s32.totalorder %s19, 0
      %p156 = por %p154, %p155
      %p157 = scmp.le.s32.totalorder 1, %s13
      %p158 = scmp.lt.s32.totalorder %s13, 3
      %p159 = pnand %p157, %p158
      %p160 = pneg %p159
      // Predicated region
      $region9: #{sublayer_connection.1} parent=5 // pred_check
        _
      $region10: #{sublayer_connection.1} parent=5 // pred_check_branch
        %162 = sbr.rel (%p159) target = $region12
      $region11: #{sublayer_connection.1} parent=5 // pred_region
        %s163 = ssub.s32 %s13, 1
        // Predicated region
        $region13: #{sublayer_connection.1} parent=11 // pred_check
          %p164 = pneg %p60
        $region14: #{sublayer_connection.1} parent=11 // pred_check_branch
          %166 = sbr.rel (%p164) target = $region16
        $region15: #{sublayer_connection.1} parent=11 // pred_region
          %s168 = ssub.s32 16, 16
          %169 = vsyncadd [#allocation3], %s168
          %s171 = sshll.u32 [#allocation2], 4
          %s172 = int_to_ptr.vmem [resolvable:$true] %s171
          %174 = dma.hbm_to_vmem [thread:$0]  %s1, 16, %s172, [#allocation3]
        $region16: #{sublayer_connection.1} parent=11 // pred_fallthru
          _
        // Predicated region
        $region17: #{sublayer_connection.1} parent=11 // pred_check
          %p175 = pneg %p81
        $region18: #{sublayer_connection.1} parent=11 // pred_check_branch
          %177 = sbr.rel (%p175) target = $region20
        $region19: #{sublayer_connection.1} parent=11 // pred_region
          %s179 = ssub.s32 16, 16
          %180 = vsyncadd [#allocation5], %s179
          %s182 = sshll.u32 [#allocation4], 4
          %s183 = int_to_ptr.vmem [resolvable:$true] %s182
          %185 = dma.hbm_to_vmem [thread:$0]  %s2, 16, %s183, [#allocation5]
        $region20: #{sublayer_connection.1} parent=11 // pred_fallthru
          _
        // Predicated region
        $region21: #{sublayer_connection.1} parent=11 // pred_check
          %p186 = pneg %p102
        $region22: #{sublayer_connection.1} parent=11 // pred_check_branch
          %188 = sbr.rel (%p186) target = $region24
        $region23: #{sublayer_connection.1} parent=11 // pred_region
          _
        $region24: #{sublayer_connection.1} parent=11 // pred_fallthru
          _
        // Predicated region
        $region25: #{sublayer_connection.1} parent=11 // pred_check
          %p189 = pneg %p123
        $region26: #{sublayer_connection.1} parent=11 // pred_check_branch
          %191 = sbr.rel (%p189) target = $region28
        $region27: #{sublayer_connection.1} parent=11 // pred_region
          _
        $region28: #{sublayer_connection.1} parent=11 // pred_fallthru
          _
      $region12: #{sublayer_connection.1} parent=5 // pred_fallthru
        _
      %p192 = scmp.lt.s32.totalorder %s13, 2
      // Predicated region
      $region29: #{sublayer_connection.1} parent=5 // pred_check
        %p193 = pneg %p192
      $region30: #{sublayer_connection.1} parent=5 // pred_check_branch
        %195 = sbr.rel (%p193) target = $region32
      $region31: #{sublayer_connection.1} parent=5 // pred_region
        // Predicated region
        $region33: #{sublayer_connection.1} parent=31 // pred_check
          %p196 = pneg %p33
        $region34: #{sublayer_connection.1} parent=31 // pred_check_branch
          %198 = sbr.rel (%p196) target = $region36
        $region35: #{sublayer_connection.1} parent=31 // pred_region
          %s199 = smul.u32 2, %s13
          %s200 = ssub.s32 3, %s199
          %p201 = scmp.lt.s32.totalorder %s200, 2
          %s202 = scalar_select %p201, %s200, 2
          %s203 = smul.u32 128, %s202
          %p204 = scmp.lt.s32.totalorder %s199, 2
          %s205 = scalar_select %p204, %s199, 2
          %s206 = smul.addr %s205, 8
          %s207 = scalar_lea.vmem %s0, %s206
          %s208 = smul.u32 2, %s13
          %s209 = ssub.s32 3, %s208
          %p210 = scmp.lt.s32.totalorder %s209, 2
          %s211 = scalar_select %p210, %s209, 2
          %s212 = smul.u32 128, %s211
        $region36: #{sublayer_connection.1} parent=31 // pred_fallthru
          _
      $region32: #{sublayer_connection.1} parent=5 // pred_fallthru
        _
      %p213 = scmp.le.s32.totalorder 1, %s13
      %p214 = scmp.lt.s32.totalorder %s13, 3
      %p215 = pnand %p213, %p214
      %p216 = pneg %p215
      // Predicated region
      $region37: #{sublayer_connection.1} parent=5 // pred_check
        _
      $region38: #{sublayer_connection.1} parent=5 // pred_check_branch
        %218 = sbr.rel (%p215) target = $region40
      $region39: #{sublayer_connection.1} parent=5 // pred_region
        %s219 = ssub.s32 %s13, 1
        // Predicated region
        $region41: #{sublayer_connection.1} parent=39 // pred_check
          %p220 = pneg %p60
        $region42: #{sublayer_connection.1} parent=39 // pred_check_branch
          %222 = sbr.rel (%p220) target = $region44
        $region43: #{sublayer_connection.1} parent=39 // pred_region
          %223 = dma.done [#allocation3], 16
        $region44: #{sublayer_connection.1} parent=39 // pred_fallthru
          _
        // Predicated region
        $region45: #{sublayer_connection.1} parent=39 // pred_check
          %p224 = pneg %p81
        $region46: #{sublayer_connection.1} parent=39 // pred_check_branch
          %226 = sbr.rel (%p224) target = $region48
        $region47: #{sublayer_connection.1} parent=39 // pred_region
          %227 = dma.done [#allocation5], 16
        $region48: #{sublayer_connection.1} parent=39 // pred_fallthru
          _
        %s228 = smul.u32 2, %s18
        %s229 = ssub.s32 3, %s228
        %p230 = scmp.lt.s32.totalorder %s229, 2
        %s231 = scalar_select %p230, %s229, 2
        %s232 = smul.u32 128, %s231
        %p233 = scmp.lt.s32.totalorder %s228, 2
        %s234 = scalar_select %p233, %s228, 2
        %s235 = smul.addr %s234, 8
        %s236 = scalar_lea.vmem %s0, %s235
        %p237 = pneg %p39
        %p238 = pneg %p36
        %p239 = pneg %p60
        %p240 = pneg %p57
        %p241 = pneg %p81
        %p242 = pneg %p78
        %p243 = pneg %p102
        %p244 = pneg %p99
        %p245 = pneg %p123
        %p246 = pneg %p120
        %p247 = pneg %p149
        %p248 = pneg %p146
        %s249 = sand.u32 %s136, 1
        %s250 = sand.u32 %s136, 1
        %s251 = smul.addr %s250, 16
        %s252 = scalar_lea.vmem [#allocation6], %s251
        %s253 = smul.u32 2, %s18
        %s254 = ssub.s32 3, %s253
        %p255 = scmp.lt.s32.totalorder %s254, 2
        %s256 = scalar_select %p255, %s254, 2
        %s257 = smul.u32 128, %s256
        %p258 = scmp.lt.s32.totalorder %s253, 2
        %s259 = scalar_select %p258, %s253, 2
        %s260 = smul.addr %s259, 8
        %s261 = scalar_lea.vmem %s0, %s260
        %s262 = smul.u32 2, %s18
        %s263 = ssub.s32 3, %s262
        %p264 = scmp.lt.s32.totalorder %s263, 2
        %s265 = scalar_select %p264, %s263, 2
        %s266 = smul.u32 128, %s265
        %s267 = smul.u32 2, %s18
        %s268 = ssub.s32 3, %s267
        %p269 = scmp.lt.s32.totalorder %s268, 2
        %s270 = scalar_select %p269, %s268, 2
        %s271 = smul.u32 128, %s270
        %v272 = vld [vmem:[%s261] sm:$0xff]
        %v273 = vld [vmem:[%s261 + $0x8] sm:$0xff]
        %274 = vadd.xlane.f32.xlu0 %v272
        %v275 = vpop.xlane.xlu0 %274
        %276 = vadd.xlane.f32.xlu0 %v273
        %v277 = vpop.xlane.xlu0 %276
        %v278 = vrcp.pop 128.0
        %v279 = vmul.f32 %v275, %v278
        %v280 = vmul.f32 %v277, %v278
        %v281 = vsub.f32 %v272, %v279
        %v282 = vsub.f32 %v273, %v280
        %v283 = vmul.f32 %v281, %v281
        %v284 = vmul.f32 %v282, %v282
        %285 = vadd.xlane.f32.xlu0 %v283
        %v286 = vpop.xlane.xlu0 %285
        %287 = vadd.xlane.f32.xlu0 %v284
        %v288 = vpop.xlane.xlu0 %287
        %v289 = vrcp.pop 127.0
        %v290 = vmul.f32 %v286, %v289
        %v291 = vmul.f32 %v288, %v289
        %v292 = vrsqrt.pop %v290
        %v293 = vmul.f32 %v290, %v292
        %vm294 = vcmp.eq.f32.partialorder %v290, inf
        %v295 = vsel %vm294, %v290, %v293
        %vm296 = vcmp.eq.f32.partialorder %v290, 0.0
        %v297 = vand.u32 %v290, 2147483648
        %v298 = vsel %vm296, %v297, %v295
        %v299 = vrsqrt.pop %v291
        %v300 = vmul.f32 %v291, %v299
        %vm301 = vcmp.eq.f32.partialorder %v291, inf
        %v302 = vsel %vm301, %v291, %v300
        %vm303 = vcmp.eq.f32.partialorder %v291, 0.0
        %v304 = vand.u32 %v291, 2147483648
        %v305 = vsel %vm303, %v304, %v302
        %v306 = vadd.f32 %v298, 1e-09
        %v307 = vadd.f32 %v305, 1e-09
        %v308 = vrcp.pop %v306
        %v309 = vmul.f32 1.0, %v308
        %v310 = vrcp.pop %v307
        %v311 = vmul.f32 1.0, %v310
        %v312 = vld [vmem:[#allocation2] sm:$0x1]
        %v313 = vld [vmem:[#allocation4] sm:$0x1]
        %v314 = vmul.f32 %v281, %v309
        %v315 = vmul.f32 %v282, %v311
        %v317 = vlaneseq
        %v318 = vshrl.u32 %v317, 7
        %v319 = vsub.s32 0, %v318
        %v320 = vrot.slane %v312, %v319
        %v322 = vmul.f32 %v314, %v320
        %v323 = vmul.f32 %v315, %v320
        %v325 = vlaneseq
        %v326 = vshrl.u32 %v325, 7
        %v327 = vsub.s32 0, %v326
        %v328 = vrot.slane %v313, %v327
        %v330 = vadd.f32 %v322, %v328
        %v331 = vadd.f32 %v323, %v328
        %v332 = vld [vmem:[%s3] sm:$0xff]
        %v333 = vld [vmem:[%s3 + $0x8] sm:$0xff]
        %v334 = vld [vmem:[%s3 + $0x10] sm:$0xff]
        %v335 = vld [vmem:[%s3 + $0x18] sm:$0xff]
        %v336 = vld [vmem:[%s3 + $0x20] sm:$0xff]
        %v337 = vld [vmem:[%s3 + $0x28] sm:$0xff]
        %v338 = vld [vmem:[%s3 + $0x30] sm:$0xff]
        %v339 = vld [vmem:[%s3 + $0x38] sm:$0xff]
        %v340 = vld [vmem:[%s3 + $0x40] sm:$0xff]
        %v341 = vld [vmem:[%s3 + $0x48] sm:$0xff]
        %v342 = vld [vmem:[%s3 + $0x50] sm:$0xff]
        %v343 = vld [vmem:[%s3 + $0x58] sm:$0xff]
        %v344 = vld [vmem:[%s3 + $0x60] sm:$0xff]
        %v345 = vld [vmem:[%s3 + $0x68] sm:$0xff]
        %v346 = vld [vmem:[%s3 + $0x70] sm:$0xff]
        %v347 = vld [vmem:[%s3 + $0x78] sm:$0xff]
        %v348 = vld [vmem:[%s4] sm:$0x1]
        %v350 = vlaneseq
        %v351 = vshrl.u32 %v350, 7
        %v352 = vsub.s32 0, %v351
        %v353 = vrot.slane %v348, %v352
        %355 = vmatprep.subr.mxu0 0.0
        %356 = vmatpush1.msra.mxu0 %v332
        %357 = vmatprep.subr.mxu0 0.0
        %358 = vmatpush1.msra.mxu0 %v333
        %359 = vmatprep.subr.mxu0 0.0
        %360 = vmatpush1.msra.mxu0 %v334
        %361 = vmatprep.subr.mxu0 0.0
        %362 = vmatpush1.msra.mxu0 %v335
        %363 = vmatprep.subr.mxu0 0.0
        %364 = vmatpush1.msra.mxu0 %v336
        %365 = vmatprep.subr.mxu0 0.0
        %366 = vmatpush1.msra.mxu0 %v337
        %367 = vmatprep.subr.mxu0 0.0
        %368 = vmatpush1.msra.mxu0 %v338
        %369 = vmatprep.subr.mxu0 0.0
        %370 = vmatpush1.msra.mxu0 %v339
        %371 = vmatprep.subr.mxu0 0.0
        %372 = vmatpush1.msra.mxu0 %v340
        %373 = vmatprep.subr.mxu0 0.0
        %374 = vmatpush1.msra.mxu0 %v341
        %375 = vmatprep.subr.mxu0 0.0
        %376 = vmatpush1.msra.mxu0 %v342
        %377 = vmatprep.subr.mxu0 0.0
        %378 = vmatpush1.msra.mxu0 %v343
        %379 = vmatprep.subr.mxu0 0.0
        %380 = vmatpush1.msra.mxu0 %v344
        %381 = vmatprep.subr.mxu0 0.0
        %382 = vmatpush1.msra.mxu0 %v345
        %383 = vmatprep.subr.mxu0 0.0
        %384 = vmatpush1.msra.mxu0 %v346
        %385 = vmatprep.subr.mxu0 0.0
        %386 = vmatpush1.msra.mxu0 %v347
        %387 = vmatprep.subr.mxu0 0.0
        %388 = vmatpush1.msra.mxu0 0.0
        %389 = vmatprep.subr.mxu0 0.0
        %390 = vmatpush1.msra.mxu0 0.0
        %391 = vmatprep.subr.mxu0 0.0
        %392 = vmatpush1.msra.mxu0 0.0
        %393 = vmatprep.subr.mxu0 0.0
        %394 = vmatpush1.msra.mxu0 0.0
        %395 = vmatprep.subr.mxu0 0.0
        %396 = vmatpush1.msra.mxu0 0.0
        %397 = vmatprep.subr.mxu0 0.0
        %398 = vmatpush1.msra.mxu0 0.0
        %399 = vmatprep.subr.mxu0 0.0
        %400 = vmatpush1.msra.mxu0 0.0
        %401 = vmatprep.subr.mxu0 0.0
        %402 = vmatpush1.msra.mxu0 0.0
        %403 = vmatprep.subr.mxu0 0.0
        %404 = vmatpush1.msra.mxu0 0.0
        %405 = vmatprep.subr.mxu0 0.0
        %406 = vmatpush1.msra.mxu0 0.0
        %407 = vmatprep.subr.mxu0 0.0
        %408 = vmatpush1.msra.mxu0 0.0
        %409 = vmatprep.subr.mxu0 0.0
        %410 = vmatpush1.msra.mxu0 0.0
        %411 = vmatprep.subr.mxu0 0.0
        %412 = vmatpush1.msra.mxu0 0.0
        %413 = vmatprep.subr.mxu0 0.0
        %414 = vmatpush1.msra.mxu0 0.0
        %415 = vmatprep.subr.mxu0 0.0
        %416 = vmatpush1.msra.mxu0 0.0
        %417 = vmatprep.subr.mxu0 0.0
        %418 = vmatpush1.msra.mxu0 0.0
        %419 = vmatprep.mubr.f32.mxu0 0.0
        %420 = vmatmul.mubr.f32.gmra.mrb[0].mxu0 %v330
        %v421 = vpop.f32.mrb[0].mxu0
        %v422 = vadd.f32 %v353, %v421
        %v423 = vpop.f32.mrb[0].mxu0
        %424 = vmatprep.mubr.f32.mxu0 0.0
        %425 = vmatmul.mubr.f32.gmra.mrb[0].mxu0 %v331
        %v426 = vpop.f32.mrb[0].mxu0
        %v427 = vadd.f32 %v353, %v426
        %v428 = vpop.f32.mrb[0].mxu0
        %429 = vdwg.mxu0
        %v430 = vadd.f32 %v272, %v422
        %v431 = vadd.f32 %v273, %v427
        %432 = vst [vmem:[%s252] sm:$0xff] %v430
        %433 = vst [vmem:[%s252 + $0x8] sm:$0xff] %v431
        %s434 = sand.u32 %s136, 1
        %s435 = sand.u32 %s136, 1
        %s436 = smul.addr %s435, 16
        %s437 = scalar_lea.vmem [#allocation6], %s436
        // Predicated region
        $region49: #{sublayer_connection.1} parent=39 // pred_check
          %p438 = pneg %p146
        $region50: #{sublayer_connection.1} parent=39 // pred_check_branch
          %440 = sbr.rel (%p438) target = $region52
        $region51: #{sublayer_connection.1} parent=39 // pred_region
          %s441 = smul.u32 2, %s18
          %s442 = ssub.s32 3, %s441
          %p443 = scmp.lt.s32.totalorder %s442, 2
          %s444 = scalar_select %p443, %s442, 2
          %s445 = smul.u32 128, %s444
          %p446 = scmp.ne.s32.totalorder 0, %s445
          %s447 = smul.addr %s441, 8
          %s448 = scalar_lea.vmem %s5, %s447
          // Predicated region
          $region53: #{sublayer_connection.1} parent=51 // pred_check
            %p449 = pneg %p446
          $region54: #{sublayer_connection.1} parent=51 // pred_check_branch
            %451 = sbr.rel (%p449) target = $region56
          $region55: #{sublayer_connection.1} parent=51 // pred_region
            // Predicated region
            $region57: #{sublayer_connection.1} parent=55 // pred_check
              _
            $region58: #{sublayer_connection.1} parent=55 // pred_check_branch
              %453 = sbr.rel (0) target = $region60
            $region59: #{sublayer_connection.1} parent=55 // pred_region
              // Predicated region
              $region79: #{sublayer_connection.1} parent=59 // pred_check
                _
              $region80: #{sublayer_connection.1} parent=59 // pred_check_branch
                %504 = sbr.rel (0) target = $region82
              $region81: #{sublayer_connection.1} parent=59 // pred_region
                %s505 = sshrl.u32 %s444, 1
                // While loop
                $region83: #{sublayer_connection.1} parent=81 // loop_pre_header
                  _
                $region84: #{sublayer_connection.1} parent=81 // loop_header
                  %s507 = sphi 0, %s509
                  %p508 = scmp.ge.s32.totalorder %s507, %s505
                  %s512 = sphi 0, %s521
                  %s513 = sphi %s437, %s524
                  %s514 = sphi %s448, %s525
                $region85: #{sublayer_connection.1} parent=81 // loop_header_branch
                  %511 = sbr.rel (%p508) target = $region89
                $region86: #{sublayer_connection.1} parent=81 // loop_body
                  %v515 = vld [vmem:[%s513] sm:$0xff]
                  %516 = vst [vmem:[%s514] sm:$0xff] %v515
                  %v517 = vld [vmem:[%s513 + $0x8] sm:$0xff]
                  %518 = vst [vmem:[%s514 + $0x8] sm:$0xff] %v517
                  %s519 = sadd.s32 1, %s512
                  %p520 = scmp.ge.s32.totalorder %s519, %s505
                  %s521 = scalar_select %p520, 0, %s519
                  %s522 = smul.u32 %s521, 16
                  %s523 = smul.u32 %s521, 16
                  %s524 = scalar_lea.vmem %s437, %s522 [#allocation6]
                  %s525 = scalar_lea.vmem %s448, %s523
                $region87: #{sublayer_connection.1} parent=81 // loop_footer
                  %s509 = sadd.s32 %s507, 1
                $region88: #{sublayer_connection.1} parent=81 // loop_footer_branch
                  %506 = sbr.rel target = $region84
                $region89: #{sublayer_connection.1} parent=81 // loop_exit
                  _
                %s526 = sshrl.u32 %s444, 1
                %s527 = sand.u32 %s444, 1
                %s528 = smul.u32 %s526, 2
                %s529 = smul.u32 8, %s528
                %s530 = scalar_lea.vmem %s437, %s529 [#allocation6]
                %s531 = smul.u32 8, %s528
                %s532 = scalar_lea.vmem %s448, %s531
                // While loop
                $region90: #{sublayer_connection.1} parent=81 // loop_pre_header
                  _
                $region91: #{sublayer_connection.1} parent=81 // loop_header
                  %s534 = sphi 0, %s536
                  %p535 = scmp.ge.s32.totalorder %s534, %s527
                  %s539 = sphi 0, %s546
                  %s540 = sphi %s530, %s549
                  %s541 = sphi %s532, %s550
                $region92: #{sublayer_connection.1} parent=81 // loop_header_branch
                  %538 = sbr.rel (%p535) target = $region96
                $region93: #{sublayer_connection.1} parent=81 // loop_body
                  %v542 = vld [vmem:[%s540] sm:$0xff]
                  %543 = vst [vmem:[%s541] sm:$0xff] %v542
                  %s544 = sadd.s32 1, %s539
                  %p545 = scmp.ge.s32.totalorder %s544, %s527
                  %s546 = scalar_select %p545, 0, %s544
                  %s547 = smul.u32 %s546, 8
                  %s548 = smul.u32 %s546, 8
                  %s549 = scalar_lea.vmem %s530, %s547 [#allocation6]
                  %s550 = scalar_lea.vmem %s532, %s548
                $region94: #{sublayer_connection.1} parent=81 // loop_footer
                  %s536 = sadd.s32 %s534, 1
                $region95: #{sublayer_connection.1} parent=81 // loop_footer_branch
                  %533 = sbr.rel target = $region91
                $region96: #{sublayer_connection.1} parent=81 // loop_exit
                  _
              $region82: #{sublayer_connection.1} parent=59 // pred_fallthru
                _
              // Predicated region
              $region97: #{sublayer_connection.1} parent=59 // pred_check
                _
              $region98: #{sublayer_connection.1} parent=59 // pred_check_branch
                %552 = sbr.rel target = $region100
              $region99: #{sublayer_connection.1} parent=59 // pred_region
                _
              $region100: #{sublayer_connection.1} parent=59 // pred_fallthru
                _
            $region60: #{sublayer_connection.1} parent=55 // pred_fallthru
              _
            // Predicated region
            $region61: #{sublayer_connection.1} parent=55 // pred_check
              _
            $region62: #{sublayer_connection.1} parent=55 // pred_check_branch
              %455 = sbr.rel target = $region64
            $region63: #{sublayer_connection.1} parent=55 // pred_region
              %s457 = sshrl.u32 %s444, 1
              // While loop
              $region65: #{sublayer_connection.1} parent=63 // loop_pre_header
                _
              $region66: #{sublayer_connection.1} parent=63 // loop_header
                %s459 = sphi 0, %s461
                %p460 = scmp.ge.s32.totalorder %s459, %s457
                %s464 = sphi 0, %s473
                %s465 = sphi %s437, %s476
                %s466 = sphi %s448, %s477
              $region67: #{sublayer_connection.1} parent=63 // loop_header_branch
                %463 = sbr.rel (%p460) target = $region71
              $region68: #{sublayer_connection.1} parent=63 // loop_body
                %v467 = vld [vmem:[%s465] sm:$0xff]
                %468 = vst [vmem:[%s466] sm:$0xff] %v467
                %v469 = vld [vmem:[%s465 + $0x8] sm:$0xff]
                %470 = vst [vmem:[%s466 + $0x8] sm:$0xff] %v469
                %s471 = sadd.s32 1, %s464
                %p472 = scmp.ge.s32.totalorder %s471, %s457
                %s473 = scalar_select %p472, 0, %s471
                %s474 = smul.u32 %s473, 16
                %s475 = smul.u32 %s473, 16
                %s476 = scalar_lea.vmem %s437, %s474 [#allocation6]
                %s477 = scalar_lea.vmem %s448, %s475
              $region69: #{sublayer_connection.1} parent=63 // loop_footer
                %s461 = sadd.s32 %s459, 1
              $region70: #{sublayer_connection.1} parent=63 // loop_footer_branch
                %458 = sbr.rel target = $region66
              $region71: #{sublayer_connection.1} parent=63 // loop_exit
                _
              %s478 = sshrl.u32 %s444, 1
              %s479 = sand.u32 %s444, 1
              %s480 = smul.u32 %s478, 2
              %s481 = smul.u32 8, %s480
              %s482 = scalar_lea.vmem %s437, %s481 [#allocation6]
              %s483 = smul.u32 8, %s480
              %s484 = scalar_lea.vmem %s448, %s483
              // While loop
              $region72: #{sublayer_connection.1} parent=63 // loop_pre_header
                _
              $region73: #{sublayer_connection.1} parent=63 // loop_header
                %s486 = sphi 0, %s488
                %p487 = scmp.ge.s32.totalorder %s486, %s479
                %s491 = sphi 0, %s498
                %s492 = sphi %s482, %s501
                %s493 = sphi %s484, %s502
              $region74: #{sublayer_connection.1} parent=63 // loop_header_branch
                %490 = sbr.rel (%p487) target = $region78
              $region75: #{sublayer_connection.1} parent=63 // loop_body
                %v494 = vld [vmem:[%s492] sm:$0xff]
                %495 = vst [vmem:[%s493] sm:$0xff] %v494
                %s496 = sadd.s32 1, %s491
                %p497 = scmp.ge.s32.totalorder %s496, %s479
                %s498 = scalar_select %p497, 0, %s496
                %s499 = smul.u32 %s498, 8
                %s500 = smul.u32 %s498, 8
                %s501 = scalar_lea.vmem %s482, %s499 [#allocation6]
                %s502 = scalar_lea.vmem %s484, %s500
              $region76: #{sublayer_connection.1} parent=63 // loop_footer
                %s488 = sadd.s32 %s486, 1
              $region77: #{sublayer_connection.1} parent=63 // loop_footer_branch
                %485 = sbr.rel target = $region73
              $region78: #{sublayer_connection.1} parent=63 // loop_exit
                _
            $region64: #{sublayer_connection.1} parent=55 // pred_fallthru
              _
          $region56: #{sublayer_connection.1} parent=51 // pred_fallthru
            _
          %553 = vnop
        $region52: #{sublayer_connection.1} parent=39 // pred_fallthru
          _
      $region40: #{sublayer_connection.1} parent=5 // pred_fallthru
        _
      %p554 = scmp.le.s32.totalorder 2, %s13
      // Predicated region
      $region101: #{sublayer_connection.1} parent=5 // pred_check
        %p555 = pneg %p554
      $region102: #{sublayer_connection.1} parent=5 // pred_check_branch
        %557 = sbr.rel (%p555) target = $region104
      $region103: #{sublayer_connection.1} parent=5 // pred_region
        %s558 = ssub.s32 %s13, 2
        // Predicated region
        $region105: #{sublayer_connection.1} parent=103 // pred_check
          %p559 = pneg %p152
        $region106: #{sublayer_connection.1} parent=103 // pred_check_branch
          %561 = sbr.rel (%p559) target = $region108
        $region107: #{sublayer_connection.1} parent=103 // pred_region
          %s562 = sand.u32 %s137, 1
          %s563 = sand.u32 %s137, 1
          %s564 = smul.addr %s563, 16
          %s565 = scalar_lea.vmem [#allocation6], %s564
        $region108: #{sublayer_connection.1} parent=103 // pred_fallthru
          _
      $region104: #{sublayer_connection.1} parent=5 // pred_fallthru
        _
    $region6: #{sublayer_connection.1} parent=1 // loop_footer
      %s17 = sadd.s32 1, %s13
    $region7: #{sublayer_connection.1} parent=1 // loop_footer_branch
      %12 = sbr.rel target = $region3
    $region8: #{sublayer_connection.1} parent=1 // loop_exit
      _
    %566 = vsyncpa [#allocation3], 1
    %s567 = scalar_lea.sflag [#allocation3], 1
    %568 = vsyncpa %s567, 1
    %569 = vsyncpa [#allocation5], 1

</llo_original>
